<compile_context>
chip_gen: v6e
topology: v6e:2x2x1
jax: 0.10.0
libtpu: 0.0.40
codegen_flags: <defaults>
</compile_context>

<pallas_src>
import functools

import jax
import jax.numpy as jnp
from jax.experimental import pallas as pl
from jax.experimental.pallas import tpu as pltpu


def _channel_attention_kernel(x_ref, w1_ref, w2_ref, o_ref, *, nb, hw, mask_lanes):
    # x_ref / o_ref: (nb, C, HW)   w1_ref: (C_red, C)   w2_ref: (C, C_red)
    C = x_ref.shape[1]
    w1 = w1_ref[...]  # native dtype straight to the MXU
    w2 = w2_ref[...]
    inv_hw = jnp.float32(1.0 / hw)

    if mask_lanes:
        # Tail lanes of a non-128-multiple tile are not guaranteed zero: mask
        # both reductions against the true spatial extent.
        lane = jax.lax.broadcasted_iota(jnp.int32, (C, hw), 1)
        valid = lane < hw
    # Column selector for stacking [avg | max] (hoisted out of the sample loop).
    lane2 = jax.lax.broadcasted_iota(jnp.int32, (C, 2), 1)

    for n in range(nb):  # static, small (<= 8): unrolled
        x = x_ref[n]  # (C, HW), input dtype

        if mask_lanes:
            x_sum = jnp.where(valid, x, jnp.array(0, dtype=x.dtype))
            x_max = jnp.where(valid, x, jnp.array(-jnp.inf, dtype=x.dtype))
        else:
            x_sum = x
            x_max = x

        # Adaptive avg pool: accumulate in f32, divide by the true spatial size.
        avg = jnp.sum(x_sum, axis=-1, keepdims=True, dtype=jnp.float32) * inv_hw
        # Adaptive max pool.
        mx = jnp.max(x_max, axis=-1, keepdims=True).astype(jnp.float32)  # (C, 1)

        # Fused shared MLP on the stacked (C, 2) pooled matrix: [avg | max].
        pooled = jnp.where(lane2 == 0, avg, mx)                            # (C, 2)
        h = jnp.dot(w1, pooled, preferred_element_type=jnp.float32)        # (C_red, 2)
        h = jnp.maximum(h, 0.0)                                            # ReLU
        y = jnp.dot(w2, h, preferred_element_type=jnp.float32)             # (C, 2)
        # Column 0 == fc(avg), column 1 == fc(max); their sum feeds the sigmoid.
        attn = jax.nn.sigmoid(jnp.sum(y, axis=1, keepdims=True))           # (C, 1)

        # Elementwise scale in the input dtype (no f32 copy of the whole tile).
        o_ref[n] = x * attn.astype(x.dtype)


def _vmem_capacity_bytes(default=64 << 20):
    """Physical VMEM per TensorCore; conservative (v7x) default on failure."""
    try:
        info = pltpu.get_tpu_info()
        cap = getattr(info, "vmem_capacity_bytes", None)
        if cap:
            return int(cap)
    except Exception:
        pass
    return default


def channel_attention(x, w1, w2):
    """x: (N, C, H, W); w1: (C_red, C); w2: (C, C_red). Returns x * attn(x)."""
    assert jnp.issubdtype(x.dtype, jnp.floating), "float inputs only (-inf max mask)"
    N, C, H, W = x.shape
    HW = H * W
    C_red = w1.shape[0]
    itemsize = jnp.dtype(x.dtype).itemsize

    x2 = x.reshape(N, C, HW)  # free layout-compatible reshape, no HBM round trip

    # ---- VMEM budgeting (generation aware: 128 MiB v5e/v6e, 64 MiB v7x) ----
    hw_lanes = -(-HW // 128) * 128                     # physical lane footprint
    per_sample = C * hw_lanes * itemsize               # one sample's VMEM tile
    weight_bytes = w1.size * jnp.dtype(w1.dtype).itemsize + \
        w2.size * jnp.dtype(w2.dtype).itemsize
    cap = _vmem_capacity_bytes()
    budget = max(cap - (8 << 20), 16 << 20)            # headroom for Mosaic scratch

    def fits(nb_, bufs=2):
        # in + out, `bufs`-deep pipelined, plus weights and a small margin.
        return 2 * bufs * nb_ * per_sample + 2 * weight_bytes + (2 << 20) <= budget

    # Pack several batch samples per grid step (amortize per-step overhead and
    # issue larger DMAs), but keep >= 2 grid steps when N > 1 so both v7x
    # TensorCores get work via the "parallel" batch axis.
    max_pack = min(8, max(1, N // 2)) if N > 1 else 1
    nb = 1
    for d in range(1, max_pack + 1):
        if N % d == 0 and fits(d):
            nb = d

    single_buffer = not fits(1)  # oversized block: drop to single buffering
    # TODO(synk): for blocks too large even single-buffered, tile HW with a
    # two-pass (reduce -> MLP -> scale) structure.

    bufs = 1 if single_buffer else 2
    vmem_limit = int(min(
        max(2 * bufs * nb * per_sample + 2 * weight_bytes + (4 << 20), 32 << 20),
        budget,
    ))

    x_spec_kwargs = {}
    o_spec_kwargs = {}
    if single_buffer:
        x_spec_kwargs = dict(pipeline_mode=pl.Buffered(1))
        o_spec_kwargs = dict(pipeline_mode=pl.Buffered(1))

    # Memory-bound kernel: tell XLA the real byte traffic (unpadded).
    cost = pl.CostEstimate(
        flops=N * (5 * C * HW + 16 * C * C_red),
        transcendentals=N * C,
        bytes_accessed=2 * N * C * HW * itemsize + 2 * weight_bytes,
    )

    kern = functools.partial(
        _channel_attention_kernel, nb=nb, hw=HW, mask_lanes=(HW % 128 != 0)
    )

    out = pl.pallas_call(
        kern,
        out_shape=jax.ShapeDtypeStruct((N, C, HW), x.dtype),
        grid_spec=pltpu.PrefetchScalarGridSpec(
            num_scalar_prefetch=0,
            grid=(N // nb,),
            in_specs=[
                pl.BlockSpec((nb, C, HW), lambda n: (n, 0, 0), **x_spec_kwargs),
                pl.BlockSpec((C_red, C), lambda n: (0, 0)),
                pl.BlockSpec((C, C_red), lambda n: (0, 0)),
            ],
            out_specs=pl.BlockSpec((nb, C, HW), lambda n: (n, 0, 0), **o_spec_kwargs),
        ),
        compiler_params=pltpu.CompilerParams(
            dimension_semantics=("parallel",),
            vmem_limit_bytes=vmem_limit,
        ),
        cost_estimate=cost,
    )(x2, w1, w2)

    return out.reshape(N, C, H, W)


def _reference(x, w1, w2):
    # Pure-JAX reference mirroring the PyTorch forward.
    avg = jnp.mean(x, axis=(2, 3), keepdims=True)           # (N, C, 1, 1)
    mx = jnp.max(x, axis=(2, 3), keepdims=True)             # (N, C, 1, 1)

    def fc(v):  # 1x1 bias-free convs == channel matmuls
        v = v[:, :, 0, 0]                                   # (N, C)
        h = jnp.maximum(v @ w1.T, 0.0)                      # (N, C_red)
        o = h @ w2.T                                        # (N, C)
        return o[:, :, None, None]

    attn = jax.nn.sigmoid(fc(avg) + fc(mx))
    return x * attn


if __name__ == "__main__":
    key = jax.random.PRNGKey(0)
    k_x, k_w1, k_w2, k_x2 = jax.random.split(key, 4)

    N, C, H, W = 2, 32, 16, 16
    reduction = 16
    C_red = C // reduction  # = 2

    x = jax.random.normal(k_x, (N, C, H, W), dtype=jnp.float32)
    w1 = jax.random.normal(k_w1, (C_red, C), dtype=jnp.float32) * 0.1
    w2 = jax.random.normal(k_w2, (C, C_red), dtype=jnp.float32) * 0.1

    out = jax.block_until_ready(channel_attention(x, w1, w2))
    ref = _reference(x, w1, w2)
    assert out.shape == ref.shape == (N, C, H, W)
    assert jnp.allclose(out, ref, atol=1e-5, rtol=1e-5), "mismatch vs reference"

    # Second case: HW = 49 (not a multiple of 128) exercises the masked-lane path.
    x_b = jax.random.normal(k_x2, (1, C, 7, 7), dtype=jnp.float32)
    out_b = jax.block_until_ready(channel_attention(x_b, w1, w2))
    ref_b = _reference(x_b, w1, w2)
    assert jnp.allclose(out_b, ref_b, atol=1e-5, rtol=1e-5), "mismatch (non-128 HW)"

    print("KERNEL_OK")
</pallas_src>

<mosaic_0001>
module attributes {stable_mosaic.version = 11 : i64} {
  func.func @_channel_attention_kernel(%arg0: i32, %arg1: memref<1x32x256xf32, #tpu.memory_space<vmem>>, %arg2: memref<2x32xf32, #tpu.memory_space<vmem>>, %arg3: memref<32x2xf32, #tpu.memory_space<vmem>>, %arg4: memref<1x32x256xf32, #tpu.memory_space<vmem>>) attributes {dimension_semantics = [#tpu.dimension_semantics<parallel>], iteration_bounds = array<i64: 2>, scalar_prefetch = 0 : i64, scratch_operands = 0 : i64, tpu.core_type = #tpu.core_type<tc>, window_params = [{transform_indices = @transform_0, window_bounds = array<i64: 1, 32, 256>}, {pipeline_mode = #tpu.pipeline_mode<synchronous>, transform_indices = @transform_1, window_bounds = array<i64: 2, 32>}, {pipeline_mode = #tpu.pipeline_mode<synchronous>, transform_indices = @transform_2, window_bounds = array<i64: 32, 2>}, {transform_indices = @transform_3, window_bounds = array<i64: 1, 32, 256>}]} {
    %c0 = arith.constant 0 : index
    %c0_0 = arith.constant 0 : index
    %0 = vector.load %arg2[%c0, %c0_0] : memref<2x32xf32, #tpu.memory_space<vmem>>, vector<2x32xf32>
    %c0_1 = arith.constant 0 : index
    %c0_2 = arith.constant 0 : index
    %1 = vector.load %arg3[%c0_1, %c0_2] : memref<32x2xf32, #tpu.memory_space<vmem>>, vector<32x2xf32>
    %2 = tpu.iota {dimensions = array<i32: 1>} : vector<32x2xi32>
    %c0_3 = arith.constant 0 : index
    %c0_4 = arith.constant 0 : index
    %c0_5 = arith.constant 0 : index
    %3 = vector.load %arg1[%c0_3, %c0_4, %c0_5] : memref<1x32x256xf32, #tpu.memory_space<vmem>>, vector<1x32x256xf32>
    %4 = vector.shape_cast %3 : vector<1x32x256xf32> to vector<32x256xf32>
    %cst = arith.constant dense<0.000000e+00> : vector<32xf32>
    %5 = vector.multi_reduction <add>, %4, %cst [1] : vector<32x256xf32> to vector<32xf32>
    %6 = vector.shape_cast %5 : vector<32xf32> to vector<32x1xf32>
    %cst_6 = arith.constant 3.906250e-03 : f32
    %7 = vector.broadcast %cst_6 : f32 to vector<32x1xf32>
    %8 = arith.mulf %6, %7 : vector<32x1xf32>
    %cst_7 = arith.constant dense<0xFF800000> : vector<32xf32>
    %9 = vector.multi_reduction <maximumf>, %4, %cst_7 [1] : vector<32x256xf32> to vector<32xf32>
    %10 = vector.shape_cast %9 : vector<32xf32> to vector<32x1xf32>
    %c0_i32 = arith.constant 0 : i32
    %11 = vector.broadcast %c0_i32 : i32 to vector<32x2xi32>
    %12 = arith.cmpi eq, %2, %11 : vector<32x2xi32>
    %13 = vector.shape_cast %8 : vector<32x1xf32> to vector<32x1xf32>
    %14 = vector.broadcast %13 : vector<32x1xf32> to vector<32x2xf32>
    %15 = vector.shape_cast %10 : vector<32x1xf32> to vector<32x1xf32>
    %16 = vector.broadcast %15 : vector<32x1xf32> to vector<32x2xf32>
    %17 = arith.select %12, %14, %16 : vector<32x2xi1>, vector<32x2xf32>
    %cst_8 = arith.constant dense<0.000000e+00> : vector<2x2xf32>
    %18 = tpu.matmul %0, %17, %cst_8 {dimension_numbers = #tpu.dot_dimension_numbers<[1], [0], [0], [1], [0, 0, 1, 1], [], []>} : vector<2x32xf32>, vector<32x2xf32>, vector<2x2xf32> -> vector<2x2xf32>
    %cst_9 = arith.constant 0.000000e+00 : f32
    %19 = vector.broadcast %cst_9 : f32 to vector<2x2xf32>
    %20 = arith.maximumf %18, %19 : vector<2x2xf32>
    %cst_10 = arith.constant dense<0.000000e+00> : vector<32x2xf32>
    %21 = tpu.matmul %1, %20, %cst_10 {dimension_numbers = #tpu.dot_dimension_numbers<[1], [0], [0], [1], [0, 0, 1, 1], [], []>} : vector<32x2xf32>, vector<2x2xf32>, vector<32x2xf32> -> vector<32x2xf32>
    %cst_11 = arith.constant dense<0.000000e+00> : vector<32xf32>
    %22 = vector.multi_reduction <add>, %21, %cst_11 [1] : vector<32x2xf32> to vector<32xf32>
    %23 = vector.shape_cast %22 : vector<32xf32> to vector<32x1xf32>
    %24 = arith.negf %23 : vector<32x1xf32>
    %25 = math.exp %24 : vector<32x1xf32>
    %cst_12 = arith.constant 1.000000e+00 : f32
    %26 = vector.broadcast %cst_12 : f32 to vector<32x1xf32>
    %27 = arith.addf %26, %25 : vector<32x1xf32>
    %28 = arith.divf %26, %27 : vector<32x1xf32>
    %29 = vector.broadcast %28 : vector<32x1xf32> to vector<32x256xf32>
    %30 = arith.mulf %4, %29 : vector<32x256xf32>
    %c0_13 = arith.constant 0 : index
    %c0_14 = arith.constant 0 : index
    %c0_15 = arith.constant 0 : index
    %31 = vector.load %arg4[%c0_13, %c0_14, %c0_15] : memref<1x32x256xf32, #tpu.memory_space<vmem>>, vector<1x32x256xf32>
    %32 = vector.shape_cast %31 : vector<1x32x256xf32> to vector<32x256xf32>
    %33 = vector.shape_cast %30 : vector<32x256xf32> to vector<1x32x256xf32>
    tpu.vector_store %arg4[%c0_13, %c0_14, %c0_15], %33 {strides = array<i32>} : memref<1x32x256xf32, #tpu.memory_space<vmem>>, vector<1x32x256xf32>,
    return
  }
  func.func @transform_0(%arg0: i32) -> (i32, i32, i32) {
    %c0_i32 = arith.constant 0 : i32
    %c0_i32_0 = arith.constant 0 : i32
    %c0_i32_1 = arith.constant 0 : i32
    return %arg0, %c0_i32, %c0_i32_0 : i32, i32, i32
  }
  func.func @transform_1(%arg0: i32) -> (i32, i32) {
    %c0_i32 = arith.constant 0 : i32
    %c0_i32_0 = arith.constant 0 : i32
    %c0_i32_1 = arith.constant 0 : i32
    return %c0_i32, %c0_i32_0 : i32, i32
  }
  func.func @transform_2(%arg0: i32) -> (i32, i32) {
    %c0_i32 = arith.constant 0 : i32
    %c0_i32_0 = arith.constant 0 : i32
    %c0_i32_1 = arith.constant 0 : i32
    return %c0_i32, %c0_i32_0 : i32, i32
  }
  func.func @transform_3(%arg0: i32) -> (i32, i32, i32) {
    %c0_i32 = arith.constant 0 : i32
    %c0_i32_0 = arith.constant 0 : i32
    %c0_i32_1 = arith.constant 0 : i32
    return %arg0, %c0_i32, %c0_i32_0 : i32, i32, i32
  }
}

</mosaic_0001>

<llo_original>
// kernel: tpu_custom_call.1
$region0: #{tpu_custom_call.1}
  #allocation0 [shape = 'u32[]', space=smem, size = 0x4, offset = 0x4, fixed_abs, tag = 'smem constant byte address 0x4 - core index']
  #allocation1 [shape = 'u32[144,128]{1,0:T(1,128)}', space=vmem, size = 0x12000, scoped, tag = 'internal scratch']
  %s0 = inlined_call_operand.hbm [shape: f32[2,32,256], index: 0, kind: input, shape index: {}]
  %s1 = inlined_call_operand.vmem [shape: f32[2,32], index: 1, kind: input, shape index: {}]
  %s2 = inlined_call_operand.vmem [shape: f32[32,2], index: 2, kind: input, shape index: {}]
  %s3 = inlined_call_operand.hbm [shape: f32[2,32,256], index: 3, kind: output, shape index: {}]
  %s4 = sld [smem:[#allocation0]]
  $region49: #{tpu_custom_call.1} parent=0
    _
  %s6 = ssub.s32 1, %s4
  %s7 = scalar_select 0, %s6, %s4
  $region1: #{tpu_custom_call.1} parent=0
    #allocation2 [shape = 'u8[65536]{0}', space=vmem, size = 0x10000, scoped, tag = 'input window, operand 0']
    #allocation3 [shape = 's32[2]{0}', space=sflag, size = 0x8, scoped, tag = 'scoped memory for tpu_custom_call.1']
    #allocation4 [shape = 's32[2]{0}', space=sflag, size = 0x8, scoped, tag = 'scoped memory for tpu_custom_call.1']
    #allocation5 [shape = 'u8[65536]{0}', space=vmem, size = 0x10000, scoped, tag = 'output window, operand 0']
    %8 = vsyncpa [#allocation3], 0
    %s9 = scalar_lea.sflag [#allocation3], 1
    %10 = vsyncpa %s9, 0
    %11 = vsyncpa [#allocation4], 0
    %s12 = scalar_lea.sflag [#allocation4], 1
    %13 = vsyncpa %s12, 0
    loop: start=0, step=1, limit=4
    $region2: #{tpu_custom_call.1} parent=1 // loop_pre_header
      _
    $region3: #{tpu_custom_call.1} parent=1 // loop_header
      %s15 = sphi 0, %s19
      %p16 = scmp.ge.s32.totalorder %s15, 4
      %s25 = sphi 0, %s27
      %s28 = sphi 0, %s25
      %s29 = sphi 0, %s28
      %s45 = sphi 0, %s29
      %s49 = sphi 0, %s49
      %s51 = sphi 0, %s49
      %s52 = sphi 0, %s51
      %s66 = sphi 0, %s52
      %s70 = sphi 0, %s70
      %s72 = sphi 0, %s70
      %s73 = sphi 0, %s72
      %s87 = sphi 0, %s73
      %s93 = sphi 0, %s95
      %s96 = sphi 0, %s93
      %s97 = sphi 0, %s96
      %s113 = sphi 0, %s97
    $region4: #{tpu_custom_call.1} parent=1 // loop_header_branch
      %18 = sbr.rel (%p16) target = $region8
    $region5: #{tpu_custom_call.1} parent=1 // loop_body
      %s20 = ssub.s32 %s15, 1
      %s21 = ssub.s32 %s15, 2
      %s22 = sadd.s32 %s15, 1
      %s23 = ssub.s32 %s15, %s22
      %p24 = scmp.eq.s32.totalorder %s23, 0
      %s26 = sadd.s32 %s25, 1
      %s27 = scalar_select %p24, %s25, %s26
      %p30 = pneg %p24
      %p31 = scmp.eq.s32.totalorder %s15, 1
      %p32 = por %p30, %p31
      %p33 = scmp.ne.s32.totalorder %s25, %s28
      %p34 = scmp.eq.s32.totalorder %s15, 0
      %p35 = por %p33, %p34
      %p36 = scmp.ne.s32.totalorder %s25, %s28
      %p37 = scmp.eq.s32.totalorder %s20, 1
      %p38 = por %p36, %p37
      %p39 = scmp.ne.s32.totalorder %s28, %s29
      %p40 = scmp.eq.s32.totalorder %s20, 0
      %p41 = por %p39, %p40
      %p42 = scmp.ne.s32.totalorder %s28, %s29
      %p43 = scmp.eq.s32.totalorder %s21, 1
      %p44 = por %p42, %p43
      %p46 = scmp.ne.s32.totalorder %s29, %s45
      %p47 = scmp.eq.s32.totalorder %s21, 0
      %p48 = por %p46, %p47
      %s50 = sadd.s32 %s49, 1
      %p53 = scmp.eq.s32.totalorder %s15, 1
      %p54 = scmp.ne.s32.totalorder %s49, %s51
      %p55 = scmp.eq.s32.totalorder %s15, 0
      %p56 = por %p54, %p55
      %p57 = scmp.ne.s32.totalorder %s49, %s51
      %p58 = scmp.eq.s32.totalorder %s20, 1
      %p59 = por %p57, %p58
      %p60 = scmp.ne.s32.totalorder %s51, %s52
      %p61 = scmp.eq.s32.totalorder %s20, 0
      %p62 = por %p60, %p61
      %p63 = scmp.ne.s32.totalorder %s51, %s52
      %p64 = scmp.eq.s32.totalorder %s21, 1
      %p65 = por %p63, %p64
      %p67 = scmp.ne.s32.totalorder %s52, %s66
      %p68 = scmp.eq.s32.totalorder %s21, 0
      %p69 = por %p67, %p68
      %s71 = sadd.s32 %s70, 1
      %p74 = scmp.eq.s32.totalorder %s15, 1
      %p75 = scmp.ne.s32.totalorder %s70, %s72
      %p76 = scmp.eq.s32.totalorder %s15, 0
      %p77 = por %p75, %p76
      %p78 = scmp.ne.s32.totalorder %s70, %s72
      %p79 = scmp.eq.s32.totalorder %s20, 1
      %p80 = por %p78, %p79
      %p81 = scmp.ne.s32.totalorder %s72, %s73
      %p82 = scmp.eq.s32.totalorder %s20, 0
      %p83 = por %p81, %p82
      %p84 = scmp.ne.s32.totalorder %s72, %s73
      %p85 = scmp.eq.s32.totalorder %s21, 1
      %p86 = por %p84, %p85
      %p88 = scmp.ne.s32.totalorder %s73, %s87
      %p89 = scmp.eq.s32.totalorder %s21, 0
      %p90 = por %p88, %p89
      %s91 = ssub.s32 %s15, %s22
      %p92 = scmp.eq.s32.totalorder %s91, 0
      %s94 = sadd.s32 %s93, 1
      %s95 = scalar_select %p92, %s93, %s94
      %p98 = pneg %p92
      %p99 = scmp.eq.s32.totalorder %s15, 1
      %p100 = por %p98, %p99
      %p101 = scmp.ne.s32.totalorder %s93, %s96
      %p102 = scmp.eq.s32.totalorder %s15, 0
      %p103 = por %p101, %p102
      %p104 = scmp.ne.s32.totalorder %s93, %s96
      %p105 = scmp.eq.s32.totalorder %s20, 1
      %p106 = por %p104, %p105
      %p107 = scmp.ne.s32.totalorder %s96, %s97
      %p108 = scmp.eq.s32.totalorder %s20, 0
      %p109 = por %p107, %p108
      %p110 = scmp.ne.s32.totalorder %s96, %s97
      %p111 = scmp.eq.s32.totalorder %s21, 1
      %p112 = por %p110, %p111
      %p114 = scmp.ne.s32.totalorder %s97, %s113
      %p115 = scmp.eq.s32.totalorder %s21, 0
      %p116 = por %p114, %p115
      %p117 = scmp.le.s32.totalorder 1, %s15
      %p118 = scmp.lt.s32.totalorder %s15, 3
      %p119 = pnand %p117, %p118
      %p120 = pneg %p119
      // Predicated region
      $region9: #{tpu_custom_call.1} parent=5 // pred_check
        _
      $region10: #{tpu_custom_call.1} parent=5 // pred_check_branch
        %122 = sbr.rel (%p119) target = $region12
      $region11: #{tpu_custom_call.1} parent=5 // pred_region
        %s123 = ssub.s32 %s15, 1
        // Predicated region
        $region13: #{tpu_custom_call.1} parent=11 // pred_check
          %p124 = pneg %p62
        $region14: #{tpu_custom_call.1} parent=11 // pred_check_branch
          %126 = sbr.rel (%p124) target = $region16
        $region15: #{tpu_custom_call.1} parent=11 // pred_region
          _
        $region16: #{tpu_custom_call.1} parent=11 // pred_fallthru
          _
        // Predicated region
        $region17: #{tpu_custom_call.1} parent=11 // pred_check
          %p127 = pneg %p83
        $region18: #{tpu_custom_call.1} parent=11 // pred_check_branch
          %129 = sbr.rel (%p127) target = $region20
        $region19: #{tpu_custom_call.1} parent=11 // pred_region
          _
        $region20: #{tpu_custom_call.1} parent=11 // pred_fallthru
          _
      $region12: #{tpu_custom_call.1} parent=5 // pred_fallthru
        _
      %p130 = scmp.lt.s32.totalorder %s15, 2
      // Predicated region
      $region21: #{tpu_custom_call.1} parent=5 // pred_check
        %p131 = pneg %p130
      $region22: #{tpu_custom_call.1} parent=5 // pred_check_branch
        %133 = sbr.rel (%p131) target = $region24
      $region23: #{tpu_custom_call.1} parent=5 // pred_region
        // Predicated region
        $region25: #{tpu_custom_call.1} parent=23 // pred_check
          %p134 = pneg %p35
        $region26: #{tpu_custom_call.1} parent=23 // pred_check_branch
          %136 = sbr.rel (%p134) target = $region28
        $region27: #{tpu_custom_call.1} parent=23 // pred_region
          %s137 = sand.u32 %s25, 1
          %s138 = scalar_lea.sflag [#allocation3], %s137
          %s139 = sand.u32 %s25, 1
          %s140 = smul.addr %s139, 64
          %s141 = scalar_lea.vmem [#allocation2], %s140
          %s143 = ssub.s32 1024, 1024
          %144 = vsyncadd %s138, %s143
          %s145 = smul.addr %s15, 8
          %s146 = smul.addr %s145, 128
          %s147 = scalar_lea.hbm %s0, %s146
          %s148 = sshll.u32 %s141, 4
          %s149 = int_to_ptr.vmem [resolvable:$true] %s148
          %154 = dma.hbm_to_vmem [thread:$0]  %s147, 1024, %s149, %s138, 256, 256, 16
        $region28: #{tpu_custom_call.1} parent=23 // pred_fallthru
          _
      $region24: #{tpu_custom_call.1} parent=5 // pred_fallthru
        _
      %p155 = scmp.le.s32.totalorder 1, %s15
      %p156 = scmp.lt.s32.totalorder %s15, 3
      %p157 = pnand %p155, %p156
      %p158 = pneg %p157
      // Predicated region
      $region29: #{tpu_custom_call.1} parent=5 // pred_check
        _
      $region30: #{tpu_custom_call.1} parent=5 // pred_check_branch
        %160 = sbr.rel (%p157) target = $region32
      $region31: #{tpu_custom_call.1} parent=5 // pred_region
        %s161 = ssub.s32 %s15, 1
        %s162 = sand.u32 %s28, 1
        %s163 = scalar_lea.sflag [#allocation3], %s162
        %s164 = sand.u32 %s28, 1
        %s165 = smul.addr %s164, 64
        %s166 = scalar_lea.vmem [#allocation2], %s165
        // Predicated region
        $region33: #{tpu_custom_call.1} parent=31 // pred_check
          %p167 = pneg %p41
        $region34: #{tpu_custom_call.1} parent=31 // pred_check_branch
          %169 = sbr.rel (%p167) target = $region36
        $region35: #{tpu_custom_call.1} parent=31 // pred_region
          %170 = dma.done %s163, 1024
        $region36: #{tpu_custom_call.1} parent=31 // pred_fallthru
          _
        %s171 = sand.u32 %s28, 1
        %s172 = scalar_lea.sflag [#allocation3], %s171
        %s173 = sand.u32 %s28, 1
        %s174 = smul.addr %s173, 64
        %s175 = scalar_lea.vmem [#allocation2], %s174
        %p176 = pneg %p41
        %p177 = pneg %p38
        %p178 = pneg %p62
        %p179 = pneg %p59
        %p180 = pneg %p83
        %p181 = pneg %p80
        %p182 = pneg %p109
        %p183 = pneg %p106
        %s184 = sand.u32 %s96, 1
        %s185 = scalar_lea.sflag [#allocation4], %s184
        %s186 = sand.u32 %s96, 1
        %s187 = smul.addr %s186, 64
        %s188 = scalar_lea.vmem [#allocation5], %s187
        %v189 = vld [vmem:[%s1] sm:$0x3]
        %v190 = vld [vmem:[%s2] sm:$0xff]
        %v191 = vld [vmem:[%s2 + $0x8] sm:$0xff]
        %v192 = vld [vmem:[%s2 + $0x10] sm:$0xff]
        %v193 = vld [vmem:[%s2 + $0x18] sm:$0xff]
        %v194 = vlaneseq
        %v195 = vand.u32 %v194, 127
        %v196 = vld [vmem:[%s166] sm:$0xff]
        %v197 = vld [vmem:[%s166 + $0x8] sm:$0xff]
        %v198 = vld [vmem:[%s166 + $0x10] sm:$0xff]
        %v199 = vld [vmem:[%s166 + $0x18] sm:$0xff]
        %v200 = vld [vmem:[%s166 + $0x20] sm:$0xff]
        %v201 = vld [vmem:[%s166 + $0x28] sm:$0xff]
        %v202 = vld [vmem:[%s166 + $0x30] sm:$0xff]
        %v203 = vld [vmem:[%s166 + $0x38] sm:$0xff]
        %v204 = vadd.f32 %v196, %v197
        %205 = vadd.xlane.f32.xlu0 %v204
        %v206 = vpop.xlane.xlu0 %205
        %v207 = vadd.f32 %v198, %v199
        %208 = vadd.xlane.f32.xlu0 %v207
        %v209 = vpop.xlane.xlu0 %208
        %v210 = vadd.f32 %v200, %v201
        %211 = vadd.xlane.f32.xlu0 %v210
        %v212 = vpop.xlane.xlu0 %211
        %v213 = vadd.f32 %v202, %v203
        %214 = vadd.xlane.f32.xlu0 %v213
        %v215 = vpop.xlane.xlu0 %214
        %v216 = vmul.f32 %v206, 0.00390625
        %v217 = vmul.f32 %v209, 0.00390625
        %v218 = vmul.f32 %v212, 0.00390625
        %v219 = vmul.f32 %v215, 0.00390625
        %v220 = vmax.f32 %v196, %v197
        %221 = vmax.xlane.f32.xlu0 %v220
        %v222 = vpop.xlane.xlu0 %221
        %v223 = vmax.f32 %v198, %v199
        %224 = vmax.xlane.f32.xlu0 %v223
        %v225 = vpop.xlane.xlu0 %224
        %v226 = vmax.f32 %v200, %v201
        %227 = vmax.xlane.f32.xlu0 %v226
        %v228 = vpop.xlane.xlu0 %227
        %v229 = vmax.f32 %v202, %v203
        %230 = vmax.xlane.f32.xlu0 %v229
        %v231 = vpop.xlane.xlu0 %230
        %vm232 = vcmp.eq.s32.totalorder %v195, 0
        %v233 = vsel %vm232, %v216, %v222
        %v234 = vsel %vm232, %v217, %v225
        %v235 = vsel %vm232, %v218, %v228
        %v236 = vsel %vm232, %v219, %v231
        %vm237 = vcmask 261120
        %v239 = vsel %vm237, %v189, 0
        %241 = vmatprep.subr.mxu0 0.0
        %242 = vmatpush1.msra.mxu0 0.0
        %243 = vmatprep.subr.mxu0 0.0
        %244 = vmatpush1.msra.mxu0 0.0
        %245 = vmatprep.subr.mxu0 0.0
        %246 = vmatpush1.msra.mxu0 0.0
        %247 = vmatprep.subr.mxu0 0.0
        %248 = vmatpush1.msra.mxu0 0.0
        %249 = vmatprep.subr.mxu0 0.0
        %250 = vmatpush1.msra.mxu0 0.0
        %251 = vmatprep.subr.mxu0 0.0
        %252 = vmatpush1.msra.mxu0 0.0
        %253 = vmatprep.subr.mxu0 0.0
        %254 = vmatpush1.msra.mxu0 0.0
        %255 = vmatprep.subr.mxu0 0.0
        %256 = vmatpush1.msra.mxu0 0.0
        %257 = vmatprep.subr.mxu0 0.0
        %258 = vmatpush1.msra.mxu0 0.0
        %259 = vmatprep.subr.mxu0 0.0
        %260 = vmatpush1.msra.mxu0 0.0
        %261 = vmatprep.subr.mxu0 0.0
        %262 = vmatpush1.msra.mxu0 0.0
        %263 = vmatprep.subr.mxu0 0.0
        %264 = vmatpush1.msra.mxu0 0.0
        %265 = vmatprep.subr.mxu0 0.0
        %266 = vmatpush1.msra.mxu0 %v236
        %267 = vmatprep.subr.mxu0 0.0
        %268 = vmatpush1.msra.mxu0 %v235
        %269 = vmatprep.subr.mxu0 0.0
        %270 = vmatpush1.msra.mxu0 %v234
        %271 = vmatprep.subr.mxu0 0.0
        %272 = vmatpush1.msra.mxu0 %v233
        %273 = vmatprep.subr.mxu0 0.0
        %274 = vmatpush2.msra.mxu0 0.0
        %275 = vmatprep.subr.mxu0 0.0
        %276 = vmatpush2.msra.mxu0 0.0
        %277 = vmatprep.subr.mxu0 0.0
        %278 = vmatpush2.msra.mxu0 0.0
        %279 = vmatprep.subr.mxu0 0.0
        %280 = vmatpush2.msra.mxu0 0.0
        %281 = vmatprep.subr.mxu0 0.0
        %282 = vmatpush2.msra.mxu0 0.0
        %283 = vmatprep.subr.mxu0 0.0
        %284 = vmatpush2.msra.mxu0 0.0
        %285 = vmatprep.subr.mxu0 0.0
        %286 = vmatpush2.msra.mxu0 0.0
        %287 = vmatprep.subr.mxu0 0.0
        %288 = vmatpush2.msra.mxu0 0.0
        %289 = vmatprep.subr.mxu0 0.0
        %290 = vmatpush2.msra.mxu0 0.0
        %291 = vmatprep.subr.mxu0 0.0
        %292 = vmatpush2.msra.mxu0 0.0
        %293 = vmatprep.subr.mxu0 0.0
        %294 = vmatpush2.msra.mxu0 0.0
        %295 = vmatprep.subr.mxu0 0.0
        %296 = vmatpush2.msra.mxu0 0.0
        %297 = vmatprep.subr.mxu0 0.0
        %298 = vmatpush2.msra.mxu0 0.0
        %299 = vmatprep.subr.mxu0 0.0
        %300 = vmatpush2.msra.mxu0 0.0
        %301 = vmatprep.subr.mxu0 0.0
        %302 = vmatpush2.msra.mxu0 0.0
        %303 = vmatprep.subr.mxu0 0.0
        %304 = vmatpush2.msra.mxu0 0.0
        %305 = vmatprep.mubr.f32.mxu0 0.0
        %306 = vmatmul.mubr.f32.gmra.mxu0 %v239
        %v307 = vpop.f32.mrf.mxu0
        %v308 = vadd.f32 0.0, %v307
        %v309 = vpop.f32.mrf.mxu0
        %310 = vdwg.mxu0
        %v311 = vmax.f32 %v308, 0.0
        %vm312 = vcmask 15360
        %v314 = vsel %vm312, %v190, 0
        %v317 = vsel %vm312, %v191, 0
        %v320 = vsel %vm312, %v192, 0
        %v323 = vsel %vm312, %v193, 0
        %vm325 = vcmask 1041408
        %v327 = vsel %vm325, %v311, 0
        %329 = vmatprep.subr.mxu0 0.0
        %330 = vmatpush1.msra.mxu0 0.0
        %331 = vmatprep.subr.mxu0 0.0
        %332 = vmatpush1.msra.mxu0 0.0
        %333 = vmatprep.subr.mxu0 0.0
        %334 = vmatpush1.msra.mxu0 0.0
        %335 = vmatprep.subr.mxu0 0.0
        %336 = vmatpush1.msra.mxu0 0.0
        %337 = vmatprep.subr.mxu0 0.0
        %338 = vmatpush1.msra.mxu0 0.0
        %339 = vmatprep.subr.mxu0 0.0
        %340 = vmatpush1.msra.mxu0 0.0
        %341 = vmatprep.subr.mxu0 0.0
        %342 = vmatpush1.msra.mxu0 0.0
        %343 = vmatprep.subr.mxu0 0.0
        %344 = vmatpush1.msra.mxu0 0.0
        %345 = vmatprep.subr.mxu0 0.0
        %346 = vmatpush1.msra.mxu0 0.0
        %347 = vmatprep.subr.mxu0 0.0
        %348 = vmatpush1.msra.mxu0 0.0
        %349 = vmatprep.subr.mxu0 0.0
        %350 = vmatpush1.msra.mxu0 0.0
        %351 = vmatprep.subr.mxu0 0.0
        %352 = vmatpush1.msra.mxu0 0.0
        %353 = vmatprep.subr.mxu0 0.0
        %354 = vmatpush1.msra.mxu0 0.0
        %355 = vmatprep.subr.mxu0 0.0
        %356 = vmatpush1.msra.mxu0 0.0
        %357 = vmatprep.subr.mxu0 0.0
        %358 = vmatpush1.msra.mxu0 0.0
        %359 = vmatprep.subr.mxu0 0.0
        %360 = vmatpush1.msra.mxu0 %v327
        %361 = vmatprep.subr.mxu0 0.0
        %362 = vmatpush2.msra.mxu0 0.0
        %363 = vmatprep.subr.mxu0 0.0
        %364 = vmatpush2.msra.mxu0 0.0
        %365 = vmatprep.subr.mxu0 0.0
        %366 = vmatpush2.msra.mxu0 0.0
        %367 = vmatprep.subr.mxu0 0.0
        %368 = vmatpush2.msra.mxu0 0.0
        %369 = vmatprep.subr.mxu0 0.0
        %370 = vmatpush2.msra.mxu0 0.0
        %371 = vmatprep.subr.mxu0 0.0
        %372 = vmatpush2.msra.mxu0 0.0
        %373 = vmatprep.subr.mxu0 0.0
        %374 = vmatpush2.msra.mxu0 0.0
        %375 = vmatprep.subr.mxu0 0.0
        %376 = vmatpush2.msra.mxu0 0.0
        %377 = vmatprep.subr.mxu0 0.0
        %378 = vmatpush2.msra.mxu0 0.0
        %379 = vmatprep.subr.mxu0 0.0
        %380 = vmatpush2.msra.mxu0 0.0
        %381 = vmatprep.subr.mxu0 0.0
        %382 = vmatpush2.msra.mxu0 0.0
        %383 = vmatprep.subr.mxu0 0.0
        %384 = vmatpush2.msra.mxu0 0.0
        %385 = vmatprep.subr.mxu0 0.0
        %386 = vmatpush2.msra.mxu0 0.0
        %387 = vmatprep.subr.mxu0 0.0
        %388 = vmatpush2.msra.mxu0 0.0
        %389 = vmatprep.subr.mxu0 0.0
        %390 = vmatpush2.msra.mxu0 0.0
        %391 = vmatprep.subr.mxu0 0.0
        %392 = vmatpush2.msra.mxu0 0.0
        %393 = vmatprep.mubr.f32.mxu0 0.0
        %394 = vmatmul.mubr.f32.gmra.mxu0 %v314
        %v395 = vpop.f32.mrf.mxu0
        %v396 = vadd.f32 0.0, %v395
        %v397 = vpop.f32.mrf.mxu0
        %398 = vmatprep.mubr.f32.mxu0 0.0
        %399 = vmatmul.mubr.f32.gmra.mxu0 %v317
        %v400 = vpop.f32.mrf.mxu0
        %v401 = vadd.f32 0.0, %v400
        %v402 = vpop.f32.mrf.mxu0
        %403 = vmatprep.mubr.f32.mxu0 0.0
        %404 = vmatmul.mubr.f32.gmra.mxu0 %v320
        %v405 = vpop.f32.mrf.mxu0
        %v406 = vadd.f32 0.0, %v405
        %v407 = vpop.f32.mrf.mxu0
        %408 = vmatprep.mubr.f32.mxu0 0.0
        %409 = vmatmul.mubr.f32.gmra.mxu0 %v323
        %v410 = vpop.f32.mrf.mxu0
        %v411 = vadd.f32 0.0, %v410
        %v412 = vpop.f32.mrf.mxu0
        %413 = vdwg.mxu0
        %v414 = vsel %vm312, %v396, 0.0
        %415 = vadd.xlane.f32.xlu0 %v414
        %v416 = vpop.xlane.xlu0 %415
        %v417 = vsel %vm312, %v401, 0.0
        %418 = vadd.xlane.f32.xlu0 %v417
        %v419 = vpop.xlane.xlu0 %418
        %v420 = vsel %vm312, %v406, 0.0
        %421 = vadd.xlane.f32.xlu0 %v420
        %v422 = vpop.xlane.xlu0 %421
        %v423 = vsel %vm312, %v411, 0.0
        %424 = vadd.xlane.f32.xlu0 %v423
        %v425 = vpop.xlane.xlu0 %424
        %v426 = vxor.u32 %v416, 2147483648
        %v427 = vxor.u32 %v419, 2147483648
        %v428 = vxor.u32 %v422, 2147483648
        %v429 = vxor.u32 %v425, 2147483648
        %v430 = vmul.f32 %v426, 1.442695
        %v431 = vpow.pop %v430
        %v432 = vmul.f32 %v427, 1.442695
        %v433 = vpow.pop %v432
        %v434 = vmul.f32 %v428, 1.442695
        %v435 = vpow.pop %v434
        %v436 = vmul.f32 %v429, 1.442695
        %v437 = vpow.pop %v436
        %v438 = vadd.f32 %v431, 1.0
        %v439 = vadd.f32 %v433, 1.0
        %v440 = vadd.f32 %v435, 1.0
        %v441 = vadd.f32 %v437, 1.0
        %v442 = vrcp.pop %v438
        %v443 = vmul.f32 1.0, %v442
        %v444 = vrcp.pop %v439
        %v445 = vmul.f32 1.0, %v444
        %v446 = vrcp.pop %v440
        %v447 = vmul.f32 1.0, %v446
        %v448 = vrcp.pop %v441
        %v449 = vmul.f32 1.0, %v448
        %v450 = vmul.f32 %v196, %v443
        %v451 = vmul.f32 %v197, %v443
        %v452 = vmul.f32 %v198, %v445
        %v453 = vmul.f32 %v199, %v445
        %v454 = vmul.f32 %v200, %v447
        %v455 = vmul.f32 %v201, %v447
        %v456 = vmul.f32 %v202, %v449
        %v457 = vmul.f32 %v203, %v449
        %458 = vst [vmem:[%s188] sm:$0xff] %v450
        %459 = vst [vmem:[%s188 + $0x8] sm:$0xff] %v451
        %460 = vst [vmem:[%s188 + $0x10] sm:$0xff] %v452
        %461 = vst [vmem:[%s188 + $0x18] sm:$0xff] %v453
        %462 = vst [vmem:[%s188 + $0x20] sm:$0xff] %v454
        %463 = vst [vmem:[%s188 + $0x28] sm:$0xff] %v455
        %464 = vst [vmem:[%s188 + $0x30] sm:$0xff] %v456
        %465 = vst [vmem:[%s188 + $0x38] sm:$0xff] %v457
        %s466 = sand.u32 %s96, 1
        %s467 = scalar_lea.sflag [#allocation4], %s466
        %s468 = sand.u32 %s96, 1
        %s469 = smul.addr %s468, 64
        %s470 = scalar_lea.vmem [#allocation5], %s469
        // Predicated region
        $region37: #{tpu_custom_call.1} parent=31 // pred_check
          %p471 = pneg %p106
        $region38: #{tpu_custom_call.1} parent=31 // pred_check_branch
          %473 = sbr.rel (%p471) target = $region40
        $region39: #{tpu_custom_call.1} parent=31 // pred_region
          %s475 = ssub.s32 1024, 1024
          %476 = vsyncadd %s467, %s475
          %s477 = smul.addr %s20, 8
          %s478 = smul.addr %s477, 128
          %s479 = scalar_lea.hbm %s3, %s478
          %s480 = sshll.u32 %s470, 4
          %s481 = int_to_ptr.vmem [resolvable:$true] %s480
          %486 = dma.vmem_to_hbm [thread:$0]  %s481, 1024, %s479, %s467, 256, 256, 16
        $region40: #{tpu_custom_call.1} parent=31 // pred_fallthru
          _
      $region32: #{tpu_custom_call.1} parent=5 // pred_fallthru
        _
      %p487 = scmp.le.s32.totalorder 2, %s15
      // Predicated region
      $region41: #{tpu_custom_call.1} parent=5 // pred_check
        %p488 = pneg %p487
      $region42: #{tpu_custom_call.1} parent=5 // pred_check_branch
        %490 = sbr.rel (%p488) target = $region44
      $region43: #{tpu_custom_call.1} parent=5 // pred_region
        %s491 = ssub.s32 %s15, 2
        // Predicated region
        $region45: #{tpu_custom_call.1} parent=43 // pred_check
          %p492 = pneg %p112
        $region46: #{tpu_custom_call.1} parent=43 // pred_check_branch
          %494 = sbr.rel (%p492) target = $region48
        $region47: #{tpu_custom_call.1} parent=43 // pred_region
          %s495 = sand.u32 %s97, 1
          %s496 = scalar_lea.sflag [#allocation4], %s495
          %s497 = sand.u32 %s97, 1
          %s498 = smul.addr %s497, 64
          %s499 = scalar_lea.vmem [#allocation5], %s498
          %500 = dma.done %s496, 1024
        $region48: #{tpu_custom_call.1} parent=43 // pred_fallthru
          _
      $region44: #{tpu_custom_call.1} parent=5 // pred_fallthru
        _
    $region6: #{tpu_custom_call.1} parent=1 // loop_footer
      %s19 = sadd.s32 1, %s15
    $region7: #{tpu_custom_call.1} parent=1 // loop_footer_branch
      %14 = sbr.rel target = $region3
    $region8: #{tpu_custom_call.1} parent=1 // loop_exit
      _
    %501 = vsyncpa [#allocation3], 1
    %s502 = scalar_lea.sflag [#allocation3], 1
    %503 = vsyncpa %s502, 1
    %504 = vsyncpa [#allocation4], 1
    %s505 = scalar_lea.sflag [#allocation4], 1
    %506 = vsyncpa %s505, 1

</llo_original>
